<compile_context>
chip_gen: v7x
topology: tpu7x:2x2x1
jax: 0.10.0
libtpu: 0.0.40
codegen_flags: <defaults>
</compile_context>

<pallas_src>
import math

import jax
import jax.numpy as jnp
from jax.experimental import pallas as pl
from jax.experimental.pallas import tpu as pltpu


def _scaling_kernel(x_ref, scale_ref, o_ref):
    # y = x * scale ; scale block is (1, TD) and broadcasts over the sublane
    # (row) axis. exp() was hoisted to the wrapper (computed once, in f32).
    o_ref[...] = x_ref[...] * scale_ref[...]


def _round_up(n, m):
    return ((n + m - 1) // m) * m


def scaling_layer_forward(x, log_scale, *, block_rows=1024, block_cols=512):
    """y = x * exp(log_scale);  log_scale.shape == (x.shape[-1],)."""
    orig_shape = x.shape
    D = orig_shape[-1]
    assert log_scale.shape == (D,), (log_scale.shape, D)

    # exp in f32 (matches the PyTorch f32 parameter), then cast to x.dtype.
    scale = jnp.exp(log_scale.astype(jnp.float32)).astype(x.dtype)

    x2d = x.reshape(-1, D)                      # fold leading dims into rows
    B = x2d.shape[0]

    # Lane-dense packing for narrow feature dims: pack k rows into one so the
    # last (lane) dim becomes a multiple of 128 -> unmasked full-width stores.
    if D < 128:
        k = math.lcm(D, 128) // D
        if B >= k and B % k == 0:
            x2d = x2d.reshape(B // k, k * D)
            scale = jnp.tile(scale, k)
            B, D = x2d.shape
        # else: narrow-D fallback below (masked stores; still correct).

    scale_row = scale.reshape(1, D)

    # ---- Tile selection (block dims never exceed the array dims) ----------
    # Feature tile: largest 128-multiple <= D, capped at block_cols, so the
    # VMEM footprint is independent of D. Ragged last feature block is masked.
    if D < 128:
        TD = D                                   # full dim (the legal choice)
    else:
        TD = min(block_cols, (D // 128) * 128)
    grid_cols = pl.cdiv(D, TD)

    # Row tile: largest multiple of 8 <= B, capped at block_rows.
    if B < 8:
        TB = B                                   # full dim (legal)
    else:
        TB = min(block_rows, (B // 8) * 8)
        # v7x megacore: if the grid would be a single block, split the row
        # axis so both TensorCores get work (no-op on single-TC v5e/v6e).
        if grid_cols == 1 and TB >= B and B > 8:
            TB = _round_up((B + 1) // 2, 8)

    grid = (pl.cdiv(B, TB), grid_cols)

    itemsize = x2d.dtype.itemsize
    cost = pl.CostEstimate(
        flops=B * D,                             # one multiply per element
        transcendentals=0,
        bytes_accessed=(2 * B * D + D) * itemsize,
    )

    y2d = pl.pallas_call(
        _scaling_kernel,
        out_shape=jax.ShapeDtypeStruct((B, D), x2d.dtype),
        grid=grid,
        in_specs=[
            pl.BlockSpec((TB, TD), lambda i, j: (i, j)),   # x tile (pipelined)
            pl.BlockSpec((1, TD), lambda i, j: (0, j)),    # scale row (tiny)
        ],
        out_specs=pl.BlockSpec((TB, TD), lambda i, j: (i, j)),
        compiler_params=pltpu.CompilerParams(
            dimension_semantics=("parallel", "parallel")),  # megacore sharding
        cost_estimate=cost,
    )(x2d, scale_row)

    return y2d.reshape(orig_shape)


if __name__ == "__main__":
    key = jax.random.PRNGKey(0)
    kx, ks = jax.random.split(key)

    # Small shapes consistent with the module: (batch, input_dim).
    # B=64, D=16 exercises the lane-dense fold ((64,16) -> (8,128) blocks).
    B, D = 64, 16
    x = jax.random.normal(kx, (B, D), jnp.float32)
    log_scale = 0.1 * jax.random.normal(ks, (D,), jnp.float32)

    y = jax.block_until_ready(scaling_layer_forward(x, log_scale))
    assert y.shape == x.shape
    assert jnp.allclose(y, x * jnp.exp(log_scale), atol=1e-5, rtol=1e-5)

    # Extra coverage of the pad-free ragged paths:
    #   (20, 16):  ragged row blocks + narrow-D fallback (B not multiple of k)
    #   (20, 200): ragged row AND feature blocks (D not a multiple of 128)
    for (b2, d2) in [(20, 16), (20, 200)]:
        k1, k2 = jax.random.split(jax.random.PRNGKey(1000 * b2 + d2))
        x2 = jax.random.normal(k1, (b2, d2), jnp.float32)
        ls2 = 0.1 * jax.random.normal(k2, (d2,), jnp.float32)
        y2 = jax.block_until_ready(scaling_layer_forward(x2, ls2))
        assert y2.shape == x2.shape
        assert jnp.allclose(y2, x2 * jnp.exp(ls2), atol=1e-5, rtol=1e-5)

    print("KERNEL_OK")
</pallas_src>

<mosaic_0001>
module attributes {stable_mosaic.version = 11 : i64} {
  func.func @_scaling_kernel(%arg0: i32, %arg1: i32, %arg2: memref<8x128xf32, #tpu.memory_space<vmem>>, %arg3: memref<1x128xf32, #tpu.memory_space<vmem>>, %arg4: memref<8x128xf32, #tpu.memory_space<vmem>>) attributes {dimension_semantics = [#tpu.dimension_semantics<parallel>, #tpu.dimension_semantics<parallel>], iteration_bounds = array<i64: 1, 1>, scalar_prefetch = 0 : i64, scratch_operands = 0 : i64, tpu.core_type = #tpu.core_type<tc>, window_params = [{transform_indices = @transform_0, window_bounds = array<i64: 8, 128>}, {transform_indices = @transform_1, window_bounds = array<i64: 1, 128>}, {transform_indices = @transform_2, window_bounds = array<i64: 8, 128>}]} {
    %c0 = arith.constant 0 : index
    %c0_0 = arith.constant 0 : index
    %0 = vector.load %arg2[%c0, %c0_0] : memref<8x128xf32, #tpu.memory_space<vmem>>, vector<8x128xf32>
    %c0_1 = arith.constant 0 : index
    %c0_2 = arith.constant 0 : index
    %1 = vector.load %arg3[%c0_1, %c0_2] : memref<1x128xf32, #tpu.memory_space<vmem>>, vector<1x128xf32>
    %2 = vector.broadcast %1 : vector<1x128xf32> to vector<8x128xf32>
    %3 = arith.mulf %0, %2 : vector<8x128xf32>
    %c0_3 = arith.constant 0 : index
    %c0_4 = arith.constant 0 : index
    %4 = vector.load %arg4[%c0_3, %c0_4] : memref<8x128xf32, #tpu.memory_space<vmem>>, vector<8x128xf32>
    tpu.vector_store %arg4[%c0_3, %c0_4], %3 {strides = array<i32>} : memref<8x128xf32, #tpu.memory_space<vmem>>, vector<8x128xf32>,
    return
  }
  func.func @transform_0(%arg0: i32, %arg1: i32) -> (i32, i32) {
    %c0_i32 = arith.constant 0 : i32
    return %arg0, %arg1 : i32, i32
  }
  func.func @transform_1(%arg0: i32, %arg1: i32) -> (i32, i32) {
    %c0_i32 = arith.constant 0 : i32
    %c0_i32_0 = arith.constant 0 : i32
    return %c0_i32, %arg1 : i32, i32
  }
  func.func @transform_2(%arg0: i32, %arg1: i32) -> (i32, i32) {
    %c0_i32 = arith.constant 0 : i32
    return %arg0, %arg1 : i32, i32
  }
}

</mosaic_0001>

<llo_original>
// kernel: tpu_custom_call.1
$region0: #{tpu_custom_call.1}
  #allocation0 [shape = 'u32[]', space=smem, size = 0x4, offset = 0x4, fixed_abs, tag = 'smem constant byte address 0x4 - core index']
  #allocation1 [shape = 'u32[144,128]{1,0:T(1,128)}', space=vmem, size = 0x12000, scoped, tag = 'internal scratch']
  %s0 = inlined_call_operand.hbm [shape: f32[8,128], index: 0, kind: input, shape index: {}]
  %s1 = inlined_call_operand.vmem [shape: f32[1,128], index: 1, kind: input, shape index: {}]
  %s2 = inlined_call_operand.hbm [shape: f32[8,128], index: 2, kind: output, shape index: {}]
  %s3 = sld [smem:[#allocation0]]
  $region22: #{tpu_custom_call.1} parent=0
    _
  %s5 = ssub.s32 1, %s3
  %s6 = scalar_select 0, %s5, %s3
  $region1: #{tpu_custom_call.1} parent=0
    #allocation2 [shape = 'u8[4096]{0}', space=vmem, size = 0x1000, scoped, tag = 'input window, operand 0, single buffered']
    #allocation3 [shape = 's32[1]{0}', space=sflag, size = 0x4, scoped, tag = 'scoped memory for tpu_custom_call.1']
    #allocation4 [shape = 's32[1]{0}', space=sflag, size = 0x4, scoped, tag = 'scoped memory for tpu_custom_call.1']
    #allocation5 [shape = 'u8[4096]{0}', space=vmem, size = 0x1000, scoped, tag = 'output window, operand 0, single buffered']
    %7 = vsyncpa [#allocation3], 0
    %8 = vsyncpa [#allocation4], 0
    // Predicated region
    $region2: #{tpu_custom_call.1} parent=1 // pred_check
      _
    $region3: #{tpu_custom_call.1} parent=1 // pred_check_branch
      %10 = sbr.rel (0) target = $region5
    $region4: #{tpu_custom_call.1} parent=1 // pred_region
      %s12 = ssub.s32 128, 128
      %13 = vsyncadd [#allocation3], %s12
      %s15 = sshll.u32 [#allocation2], 4
      %s16 = int_to_ptr.vmem [resolvable:$true] %s15
      %18 = dma.hbm_to_vmem [thread:$0]  %s0, 128, %s16, [#allocation3]
    $region5: #{tpu_custom_call.1} parent=1 // pred_fallthru
      _
    // Predicated region
    $region6: #{tpu_custom_call.1} parent=1 // pred_check
      _
    $region7: #{tpu_custom_call.1} parent=1 // pred_check_branch
      %20 = sbr.rel (0) target = $region9
    $region8: #{tpu_custom_call.1} parent=1 // pred_region
      _
    $region9: #{tpu_custom_call.1} parent=1 // pred_fallthru
      _
    // Predicated region
    $region10: #{tpu_custom_call.1} parent=1 // pred_check
      _
    $region11: #{tpu_custom_call.1} parent=1 // pred_check_branch
      %22 = sbr.rel (0) target = $region13
    $region12: #{tpu_custom_call.1} parent=1 // pred_region
      %23 = dma.done [#allocation3], 128
    $region13: #{tpu_custom_call.1} parent=1 // pred_fallthru
      _
    %v24 = vld [vmem:[#allocation2] sm:$0xff]
    %v25 = vld [vmem:[%s1] sm:$0x1]
    %v27 = vlaneseq
    %v28 = vshrl.u32 %v27, 7
    %v29 = vsub.s32 0, %v28
    %v30 = vrot.slane %v25, %v29
    %v32 = vmul.f32 %v24, %v30
    %33 = vst [vmem:[#allocation5] sm:$0xff] %v32
    // Predicated region
    $region14: #{tpu_custom_call.1} parent=1 // pred_check
      _
    $region15: #{tpu_custom_call.1} parent=1 // pred_check_branch
      %35 = sbr.rel (0) target = $region17
    $region16: #{tpu_custom_call.1} parent=1 // pred_region
      %s37 = ssub.s32 128, 128
      %38 = vsyncadd [#allocation4], %s37
      %s40 = sshll.u32 [#allocation5], 4
      %s41 = int_to_ptr.vmem [resolvable:$true] %s40
      %43 = dma.vmem_to_hbm [thread:$0]  %s41, 128, %s2, [#allocation4]
    $region17: #{tpu_custom_call.1} parent=1 // pred_fallthru
      _
    // Predicated region
    $region18: #{tpu_custom_call.1} parent=1 // pred_check
      _
    $region19: #{tpu_custom_call.1} parent=1 // pred_check_branch
      %45 = sbr.rel (0) target = $region21
    $region20: #{tpu_custom_call.1} parent=1 // pred_region
      %46 = dma.done [#allocation4], 128
    $region21: #{tpu_custom_call.1} parent=1 // pred_fallthru
      _
    %47 = vsyncpa [#allocation3], 1
    %48 = vsyncpa [#allocation4], 1

</llo_original>
